<compile_context>
chip_gen: v5e
topology: v5e:2x2
jax: 0.10.0
libtpu: 0.0.40
codegen_flags: <defaults>
</compile_context>

<pallas_src>
import functools

import jax
import jax.numpy as jnp
from jax import lax
from jax.experimental import pallas as pl
from jax.experimental.pallas import tpu as pltpu


def _idcnn_kernel(x_ref, w_ref, bias_ref, a_ref, beta_ref, o_ref, *,
                  kernel_size, dilation, eps):
    # x_ref:    (TB, L, C_in)       activations, (B, L, C) layout — no transposes anywhere
    # w_ref:    (K*C_in, C_out)     im2col conv weights: w2[k*C_in + ci, co] = w[co, ci, k]
    # bias_ref: (1, C_out)
    # a_ref:    (L, 1)              LayerNorm scale (over the length dim)
    # beta_ref: (L, 1)              LayerNorm shift
    # o_ref:    (TB, L, C_out)
    TB, L, C_in = x_ref.shape
    C_out = o_ref.shape[-1]
    K = kernel_size
    pad = (K // 2) + dilation - 1

    x = x_ref[...].astype(jnp.float32)                               # (TB, L, C_in)

    # --- dilated Conv1d as ONE im2col matmul (halo handled in VMEM, no HBM pad) ---
    if pad > 0:
        z = jnp.zeros((TB, pad, C_in), dtype=x.dtype)
        xp = jnp.concatenate([z, x, z], axis=1)                      # (TB, L + 2*pad, C_in)
    else:
        xp = x
    taps = [xp[:, k * dilation:k * dilation + L, :] for k in range(K)]
    xcat = taps[0] if K == 1 else jnp.concatenate(taps, axis=-1)     # (TB, L, K*C_in)

    acc = jnp.dot(xcat.reshape(TB * L, K * C_in), w_ref[...],
                  preferred_element_type=jnp.float32)                # (TB*L, C_out)

    # bias + ReLU in one fused elementwise pass (no broadcast-filled accumulator)
    y = jnp.maximum(acc + bias_ref[...], 0.0).reshape(TB, L, C_out)

    # --- LayerNorm over the length dim (torch.std is unbiased -> /(L-1); eps added to std) ---
    mean = jnp.mean(y, axis=1, keepdims=True)                        # (TB, 1, C_out)
    var = jnp.sum((y - mean) ** 2, axis=1, keepdims=True) * (1.0 / (L - 1))
    # approx=True reciprocal was evaluated; kept exact to hold the 1e-4 reference tolerance.
    inv = pl.reciprocal(jnp.sqrt(var) + eps, approx=False)
    y = a_ref[...] * (y - mean) * inv + beta_ref[...]                # (L,1) broadcasts over C

    # --- residual with the (B, L, C) input; store directly in (B, L, C) ---
    o_ref[...] = (y + x).astype(o_ref.dtype)


def _pick_block_batch(B, L, C, K, *, vmem_budget_bytes=6 * 1024 * 1024):
    """How many batch elements per grid step (keeps >=2 grid steps, respects a VMEM budget)."""
    # rough per-batch-element working set: double-buffered in/out blocks + im2col temporaries
    per_b = L * C * 4 * (K + 6)
    tb = max(1, min(B, vmem_budget_bytes // max(per_b, 1)))
    if B >= 2:
        tb = min(tb, (B + 1) // 2)       # >= 2 grid steps: megacore sharding / v7x dual-TC
    while B % tb:                        # avoid a ragged last block
        tb -= 1
    return tb


def idcnn_layer(x_blc, weight, bias, ln_a, ln_b, *, dilation=1, eps=1e-6):
    """x_blc: (B, L, C_in) float32; weight: (C_out, C_in, K) torch layout. Returns (B, L, C_out)."""
    B, L, C_in = x_blc.shape
    C_out, C_in_w, K = weight.shape
    assert C_in == C_in_w and C_out == C_in, "residual add requires in_channels == out_channels"
    assert ln_a.shape == (L,) and ln_b.shape == (L,)
    assert L >= 2, "unbiased std over the length dim needs L >= 2"

    # Tiny parameter-only reshapes (no HBM pass over the activation tensor):
    w2 = jnp.transpose(weight, (2, 1, 0)).reshape(K * C_in, C_out)   # im2col weight layout
    bias2 = bias.reshape(1, C_out)
    a2 = ln_a.reshape(L, 1)
    b2 = ln_b.reshape(L, 1)

    TB = _pick_block_batch(B, L, max(C_in, C_out), K)
    grid = (B // TB,)

    kernel = functools.partial(_idcnn_kernel, kernel_size=K, dilation=dilation, eps=eps)

    return pl.pallas_call(
        kernel,
        out_shape=jax.ShapeDtypeStruct((B, L, C_out), x_blc.dtype),
        grid_spec=pltpu.PrefetchScalarGridSpec(
            num_scalar_prefetch=0,
            grid=grid,
            in_specs=[
                pl.BlockSpec((TB, L, C_in), lambda i: (i, 0, 0)),
                pl.BlockSpec((K * C_in, C_out), lambda i: (0, 0)),   # constant index -> resident
                pl.BlockSpec((1, C_out), lambda i: (0, 0)),
                pl.BlockSpec((L, 1), lambda i: (0, 0)),
                pl.BlockSpec((L, 1), lambda i: (0, 0)),
            ],
            out_specs=pl.BlockSpec((TB, L, C_out), lambda i: (i, 0, 0)),
        ),
        compiler_params=pltpu.CompilerParams(
            dimension_semantics=("parallel",),
            vmem_limit_bytes=32 * 1024 * 1024,
        ),
    )(x_blc, w2, bias2, a2, b2)


def _reference(x_blc, weight, bias, ln_a, ln_b, *, dilation=1, eps=1e-6):
    """Pure-JAX reference mirroring the PyTorch forward."""
    B, L, C = x_blc.shape
    K = weight.shape[-1]
    pad = (K // 2) + dilation - 1
    x_ncl = jnp.transpose(x_blc, (0, 2, 1))
    y = lax.conv_general_dilated(
        x_ncl, weight, window_strides=(1,), padding=[(pad, pad)],
        rhs_dilation=(dilation,), dimension_numbers=("NCH", "OIH", "NCH"),
        precision=lax.Precision.HIGHEST,
    ) + bias[None, :, None]
    y = jnp.maximum(y, 0.0)
    mean = jnp.mean(y, axis=-1, keepdims=True)
    std = jnp.sqrt(jnp.sum((y - mean) ** 2, axis=-1, keepdims=True) / (L - 1))
    y = ln_a * (y - mean) / (std + eps) + ln_b
    y = y + x_ncl
    return jnp.transpose(y, (0, 2, 1))


if __name__ == "__main__":
    B, L, C = 2, 32, 16          # batch, max_length (seq), in_channels == out_channels
    K = 3

    key = jax.random.PRNGKey(0)
    k_x, k_w, k_b, k_a, k_g = jax.random.split(key, 5)
    x = jax.random.normal(k_x, (B, L, C), dtype=jnp.float32)
    weight = 0.1 * jax.random.normal(k_w, (C, C, K), dtype=jnp.float32)   # (C_out, C_in, K)
    bias = 0.1 * jax.random.normal(k_b, (C,), dtype=jnp.float32)
    ln_a = 1.0 + 0.05 * jax.random.normal(k_a, (L,), dtype=jnp.float32)   # LayerNorm(max_length).a
    ln_b = 0.05 * jax.random.normal(k_g, (L,), dtype=jnp.float32)         # LayerNorm(max_length).b

    for dilation in (1, 2):
        out = idcnn_layer(x, weight, bias, ln_a, ln_b, dilation=dilation)
        out = jax.block_until_ready(out)
        ref = _reference(x, weight, bias, ln_a, ln_b, dilation=dilation)
        assert out.shape == (B, L, C)
        assert jnp.allclose(out, ref, rtol=1e-4, atol=1e-4), f"mismatch vs reference (dilation={dilation})"

    print("KERNEL_OK")
</pallas_src>

<mosaic_0001>
module attributes {stable_mosaic.version = 11 : i64} {
  func.func @_idcnn_kernel(%arg0: i32, %arg1: memref<1x32x16xf32, #tpu.memory_space<vmem>>, %arg2: memref<48x16xf32, #tpu.memory_space<vmem>>, %arg3: memref<1x16xf32, #tpu.memory_space<vmem>>, %arg4: memref<32x1xf32, #tpu.memory_space<vmem>>, %arg5: memref<32x1xf32, #tpu.memory_space<vmem>>, %arg6: memref<1x32x16xf32, #tpu.memory_space<vmem>>) attributes {dimension_semantics = [#tpu.dimension_semantics<parallel>], iteration_bounds = array<i64: 2>, scalar_prefetch = 0 : i64, scratch_operands = 0 : i64, tpu.core_type = #tpu.core_type<tc>, window_params = [{transform_indices = @transform_0, window_bounds = array<i64: 1, 32, 16>}, {pipeline_mode = #tpu.pipeline_mode<synchronous>, transform_indices = @transform_1, window_bounds = array<i64: 48, 16>}, {pipeline_mode = #tpu.pipeline_mode<synchronous>, transform_indices = @transform_2, window_bounds = array<i64: 1, 16>}, {pipeline_mode = #tpu.pipeline_mode<synchronous>, transform_indices = @transform_3, window_bounds = array<i64: 32, 1>}, {pipeline_mode = #tpu.pipeline_mode<synchronous>, transform_indices = @transform_4, window_bounds = array<i64: 32, 1>}, {transform_indices = @transform_5, window_bounds = array<i64: 1, 32, 16>}]} {
    %c0 = arith.constant 0 : index
    %c0_0 = arith.constant 0 : index
    %c0_1 = arith.constant 0 : index
    %0 = vector.load %arg1[%c0, %c0_0, %c0_1] : memref<1x32x16xf32, #tpu.memory_space<vmem>>, vector<1x32x16xf32>
    %cst = arith.constant 0.000000e+00 : f32
    %1 = vector.broadcast %cst : f32 to vector<1x1x16xf32>
    %2 = tpu.concatenate %1, %0, %1 in 1 : vector<1x1x16xf32>, vector<1x32x16xf32>, vector<1x1x16xf32> -> vector<1x34x16xf32>
    %3 = vector.extract_strided_slice %2 {offsets = [0, 0, 0], sizes = [1, 32, 16], strides = [1, 1, 1]} : vector<1x34x16xf32> to vector<1x32x16xf32>
    %4 = vector.extract_strided_slice %2 {offsets = [0, 1, 0], sizes = [1, 32, 16], strides = [1, 1, 1]} : vector<1x34x16xf32> to vector<1x32x16xf32>
    %5 = vector.extract_strided_slice %2 {offsets = [0, 2, 0], sizes = [1, 32, 16], strides = [1, 1, 1]} : vector<1x34x16xf32> to vector<1x32x16xf32>
    %6 = tpu.concatenate %3, %4, %5 in 2 : vector<1x32x16xf32>, vector<1x32x16xf32>, vector<1x32x16xf32> -> vector<1x32x48xf32>
    %7 = vector.shape_cast %6 : vector<1x32x48xf32> to vector<32x48xf32>
    %c0_2 = arith.constant 0 : index
    %c0_3 = arith.constant 0 : index
    %8 = vector.load %arg2[%c0_2, %c0_3] : memref<48x16xf32, #tpu.memory_space<vmem>>, vector<48x16xf32>
    %cst_4 = arith.constant dense<0.000000e+00> : vector<32x16xf32>
    %9 = tpu.matmul %7, %8, %cst_4 {dimension_numbers = #tpu.dot_dimension_numbers<[1], [0], [0], [1], [0, 0, 1, 1], [], []>} : vector<32x48xf32>, vector<48x16xf32>, vector<32x16xf32> -> vector<32x16xf32>
    %c0_5 = arith.constant 0 : index
    %c0_6 = arith.constant 0 : index
    %10 = vector.load %arg3[%c0_5, %c0_6] : memref<1x16xf32, #tpu.memory_space<vmem>>, vector<1x16xf32>
    %11 = vector.broadcast %10 : vector<1x16xf32> to vector<32x16xf32>
    %12 = arith.addf %9, %11 : vector<32x16xf32>
    %cst_7 = arith.constant 0.000000e+00 : f32
    %13 = vector.broadcast %cst_7 : f32 to vector<32x16xf32>
    %14 = arith.maximumf %12, %13 : vector<32x16xf32>
    %15 = vector.shape_cast %14 : vector<32x16xf32> to vector<1x32x16xf32>
    %cst_8 = arith.constant dense<0.000000e+00> : vector<1x16xf32>
    %16 = vector.multi_reduction <add>, %15, %cst_8 [1] : vector<1x32x16xf32> to vector<1x16xf32>
    %17 = vector.shape_cast %16 : vector<1x16xf32> to vector<1x1x16xf32>
    %cst_9 = arith.constant 3.200000e+01 : f32
    %18 = vector.broadcast %cst_9 : f32 to vector<1x1x16xf32>
    %19 = arith.divf %17, %18 : vector<1x1x16xf32>
    %20 = vector.broadcast %19 : vector<1x1x16xf32> to vector<1x32x16xf32>
    %21 = arith.subf %15, %20 : vector<1x32x16xf32>
    %22 = arith.mulf %21, %21 : vector<1x32x16xf32>
    %cst_10 = arith.constant dense<0.000000e+00> : vector<1x16xf32>
    %23 = vector.multi_reduction <add>, %22, %cst_10 [1] : vector<1x32x16xf32> to vector<1x16xf32>
    %24 = vector.shape_cast %23 : vector<1x16xf32> to vector<1x1x16xf32>
    %cst_11 = arith.constant 0.0322580636 : f32
    %25 = vector.broadcast %cst_11 : f32 to vector<1x1x16xf32>
    %26 = arith.mulf %24, %25 : vector<1x1x16xf32>
    %27 = math.sqrt %26 : vector<1x1x16xf32>
    %cst_12 = arith.constant 9.99999997E-7 : f32
    %28 = vector.broadcast %cst_12 : f32 to vector<1x1x16xf32>
    %29 = arith.addf %27, %28 : vector<1x1x16xf32>
    %30 = tpu.reciprocal %29 : vector<1x1x16xf32> -> vector<1x1x16xf32>
    %c0_13 = arith.constant 0 : index
    %c0_14 = arith.constant 0 : index
    %31 = vector.load %arg4[%c0_13, %c0_14] : memref<32x1xf32, #tpu.memory_space<vmem>>, vector<32x1xf32>
    %32 = vector.broadcast %19 : vector<1x1x16xf32> to vector<1x32x16xf32>
    %33 = arith.subf %15, %32 : vector<1x32x16xf32>
    %34 = vector.shape_cast %31 : vector<32x1xf32> to vector<1x32x1xf32>
    %35 = vector.broadcast %34 : vector<1x32x1xf32> to vector<1x32x16xf32>
    %36 = arith.mulf %35, %33 : vector<1x32x16xf32>
    %37 = vector.broadcast %30 : vector<1x1x16xf32> to vector<1x32x16xf32>
    %38 = arith.mulf %36, %37 : vector<1x32x16xf32>
    %c0_15 = arith.constant 0 : index
    %c0_16 = arith.constant 0 : index
    %39 = vector.load %arg5[%c0_15, %c0_16] : memref<32x1xf32, #tpu.memory_space<vmem>>, vector<32x1xf32>
    %40 = vector.shape_cast %39 : vector<32x1xf32> to vector<1x32x1xf32>
    %41 = vector.broadcast %40 : vector<1x32x1xf32> to vector<1x32x16xf32>
    %42 = arith.addf %38, %41 : vector<1x32x16xf32>
    %43 = arith.addf %42, %0 : vector<1x32x16xf32>
    %c0_17 = arith.constant 0 : index
    %c0_18 = arith.constant 0 : index
    %c0_19 = arith.constant 0 : index
    %44 = vector.load %arg6[%c0_17, %c0_18, %c0_19] : memref<1x32x16xf32, #tpu.memory_space<vmem>>, vector<1x32x16xf32>
    tpu.vector_store %arg6[%c0_17, %c0_18, %c0_19], %43 {strides = array<i32>} : memref<1x32x16xf32, #tpu.memory_space<vmem>>, vector<1x32x16xf32>,
    return
  }
  func.func @transform_0(%arg0: i32) -> (i32, i32, i32) {
    %c0_i32 = arith.constant 0 : i32
    %c0_i32_0 = arith.constant 0 : i32
    %c0_i32_1 = arith.constant 0 : i32
    return %arg0, %c0_i32, %c0_i32_0 : i32, i32, i32
  }
  func.func @transform_1(%arg0: i32) -> (i32, i32) {
    %c0_i32 = arith.constant 0 : i32
    %c0_i32_0 = arith.constant 0 : i32
    %c0_i32_1 = arith.constant 0 : i32
    return %c0_i32, %c0_i32_0 : i32, i32
  }
  func.func @transform_2(%arg0: i32) -> (i32, i32) {
    %c0_i32 = arith.constant 0 : i32
    %c0_i32_0 = arith.constant 0 : i32
    %c0_i32_1 = arith.constant 0 : i32
    return %c0_i32, %c0_i32_0 : i32, i32
  }
  func.func @transform_3(%arg0: i32) -> (i32, i32) {
    %c0_i32 = arith.constant 0 : i32
    %c0_i32_0 = arith.constant 0 : i32
    %c0_i32_1 = arith.constant 0 : i32
    return %c0_i32, %c0_i32_0 : i32, i32
  }
  func.func @transform_4(%arg0: i32) -> (i32, i32) {
    %c0_i32 = arith.constant 0 : i32
    %c0_i32_0 = arith.constant 0 : i32
    %c0_i32_1 = arith.constant 0 : i32
    return %c0_i32, %c0_i32_0 : i32, i32
  }
  func.func @transform_5(%arg0: i32) -> (i32, i32, i32) {
    %c0_i32 = arith.constant 0 : i32
    %c0_i32_0 = arith.constant 0 : i32
    %c0_i32_1 = arith.constant 0 : i32
    return %arg0, %c0_i32, %c0_i32_0 : i32, i32, i32
  }
}

</mosaic_0001>

<llo_original>
// kernel: tpu_custom_call.1
$region0: #{tpu_custom_call.1}
  #allocation0 [shape = 'u32[]', space=smem, size = 0x4, offset = 0x4, fixed_abs, tag = 'smem constant byte address 0x4 - core index']
  #allocation1 [shape = 'u32[72,128]{1,0:T(1,128)}', space=vmem, size = 0x9000, scoped, tag = 'internal scratch']
  %s0 = inlined_call_operand.vmem [shape: f32[2,32,16], index: 0, kind: input, shape index: {}]
  %s1 = inlined_call_operand.vmem [shape: f32[48,16], index: 1, kind: input, shape index: {}]
  %s2 = inlined_call_operand.vmem [shape: f32[1,16], index: 2, kind: input, shape index: {}]
  %s3 = inlined_call_operand.vmem [shape: f32[32,1], index: 3, kind: input, shape index: {}]
  %s4 = inlined_call_operand.vmem [shape: f32[32,1], index: 4, kind: input, shape index: {}]
  %s5 = inlined_call_operand.vmem [shape: f32[2,32,16], index: 5, kind: output, shape index: {}]
  %s6 = sld [smem:[#allocation0]]
  $region53: #{tpu_custom_call.1} parent=0
    _
  %s8 = ssub.s32 1, %s6
  %s9 = scalar_select 0, %s8, %s6
  loop: start=0, step=1, limit=4
  $region2: #{tpu_custom_call.1} parent=0 // loop_pre_header
    _
  $region3: #{tpu_custom_call.1} parent=0 // loop_header
    %s11 = sphi 0, %s15
    %p12 = scmp.ge.s32.totalorder %s11, 4
    %s21 = sphi 0, %s23
    %s24 = sphi 0, %s21
    %s25 = sphi 0, %s24
    %s41 = sphi 0, %s25
    %s45 = sphi 0, %s45
    %s47 = sphi 0, %s45
    %s48 = sphi 0, %s47
    %s62 = sphi 0, %s48
    %s66 = sphi 0, %s66
    %s68 = sphi 0, %s66
    %s69 = sphi 0, %s68
    %s83 = sphi 0, %s69
    %s87 = sphi 0, %s87
    %s89 = sphi 0, %s87
    %s90 = sphi 0, %s89
    %s104 = sphi 0, %s90
    %s108 = sphi 0, %s108
    %s110 = sphi 0, %s108
    %s111 = sphi 0, %s110
    %s125 = sphi 0, %s111
    %s131 = sphi 0, %s133
    %s134 = sphi 0, %s131
    %s135 = sphi 0, %s134
    %s151 = sphi 0, %s135
  $region4: #{tpu_custom_call.1} parent=0 // loop_header_branch
    %14 = sbr.rel (%p12) target = $region8
  $region5: #{tpu_custom_call.1} parent=0 // loop_body
    %s16 = ssub.s32 %s11, 1
    %s17 = ssub.s32 %s11, 2
    %s18 = sadd.s32 %s11, 1
    %s19 = ssub.s32 %s11, %s18
    %p20 = scmp.eq.s32.totalorder %s19, 0
    %s22 = sadd.s32 %s21, 1
    %s23 = scalar_select %p20, %s21, %s22
    %p26 = pneg %p20
    %p27 = scmp.eq.s32.totalorder %s11, 1
    %p28 = por %p26, %p27
    %p29 = scmp.ne.s32.totalorder %s21, %s24
    %p30 = scmp.eq.s32.totalorder %s11, 0
    %p31 = por %p29, %p30
    %p32 = scmp.ne.s32.totalorder %s21, %s24
    %p33 = scmp.eq.s32.totalorder %s16, 1
    %p34 = por %p32, %p33
    %p35 = scmp.ne.s32.totalorder %s24, %s25
    %p36 = scmp.eq.s32.totalorder %s16, 0
    %p37 = por %p35, %p36
    %p38 = scmp.ne.s32.totalorder %s24, %s25
    %p39 = scmp.eq.s32.totalorder %s17, 1
    %p40 = por %p38, %p39
    %p42 = scmp.ne.s32.totalorder %s25, %s41
    %p43 = scmp.eq.s32.totalorder %s17, 0
    %p44 = por %p42, %p43
    %s46 = sadd.s32 %s45, 1
    %p49 = scmp.eq.s32.totalorder %s11, 1
    %p50 = scmp.ne.s32.totalorder %s45, %s47
    %p51 = scmp.eq.s32.totalorder %s11, 0
    %p52 = por %p50, %p51
    %p53 = scmp.ne.s32.totalorder %s45, %s47
    %p54 = scmp.eq.s32.totalorder %s16, 1
    %p55 = por %p53, %p54
    %p56 = scmp.ne.s32.totalorder %s47, %s48
    %p57 = scmp.eq.s32.totalorder %s16, 0
    %p58 = por %p56, %p57
    %p59 = scmp.ne.s32.totalorder %s47, %s48
    %p60 = scmp.eq.s32.totalorder %s17, 1
    %p61 = por %p59, %p60
    %p63 = scmp.ne.s32.totalorder %s48, %s62
    %p64 = scmp.eq.s32.totalorder %s17, 0
    %p65 = por %p63, %p64
    %s67 = sadd.s32 %s66, 1
    %p70 = scmp.eq.s32.totalorder %s11, 1
    %p71 = scmp.ne.s32.totalorder %s66, %s68
    %p72 = scmp.eq.s32.totalorder %s11, 0
    %p73 = por %p71, %p72
    %p74 = scmp.ne.s32.totalorder %s66, %s68
    %p75 = scmp.eq.s32.totalorder %s16, 1
    %p76 = por %p74, %p75
    %p77 = scmp.ne.s32.totalorder %s68, %s69
    %p78 = scmp.eq.s32.totalorder %s16, 0
    %p79 = por %p77, %p78
    %p80 = scmp.ne.s32.totalorder %s68, %s69
    %p81 = scmp.eq.s32.totalorder %s17, 1
    %p82 = por %p80, %p81
    %p84 = scmp.ne.s32.totalorder %s69, %s83
    %p85 = scmp.eq.s32.totalorder %s17, 0
    %p86 = por %p84, %p85
    %s88 = sadd.s32 %s87, 1
    %p91 = scmp.eq.s32.totalorder %s11, 1
    %p92 = scmp.ne.s32.totalorder %s87, %s89
    %p93 = scmp.eq.s32.totalorder %s11, 0
    %p94 = por %p92, %p93
    %p95 = scmp.ne.s32.totalorder %s87, %s89
    %p96 = scmp.eq.s32.totalorder %s16, 1
    %p97 = por %p95, %p96
    %p98 = scmp.ne.s32.totalorder %s89, %s90
    %p99 = scmp.eq.s32.totalorder %s16, 0
    %p100 = por %p98, %p99
    %p101 = scmp.ne.s32.totalorder %s89, %s90
    %p102 = scmp.eq.s32.totalorder %s17, 1
    %p103 = por %p101, %p102
    %p105 = scmp.ne.s32.totalorder %s90, %s104
    %p106 = scmp.eq.s32.totalorder %s17, 0
    %p107 = por %p105, %p106
    %s109 = sadd.s32 %s108, 1
    %p112 = scmp.eq.s32.totalorder %s11, 1
    %p113 = scmp.ne.s32.totalorder %s108, %s110
    %p114 = scmp.eq.s32.totalorder %s11, 0
    %p115 = por %p113, %p114
    %p116 = scmp.ne.s32.totalorder %s108, %s110
    %p117 = scmp.eq.s32.totalorder %s16, 1
    %p118 = por %p116, %p117
    %p119 = scmp.ne.s32.totalorder %s110, %s111
    %p120 = scmp.eq.s32.totalorder %s16, 0
    %p121 = por %p119, %p120
    %p122 = scmp.ne.s32.totalorder %s110, %s111
    %p123 = scmp.eq.s32.totalorder %s17, 1
    %p124 = por %p122, %p123
    %p126 = scmp.ne.s32.totalorder %s111, %s125
    %p127 = scmp.eq.s32.totalorder %s17, 0
    %p128 = por %p126, %p127
    %s129 = ssub.s32 %s11, %s18
    %p130 = scmp.eq.s32.totalorder %s129, 0
    %s132 = sadd.s32 %s131, 1
    %s133 = scalar_select %p130, %s131, %s132
    %p136 = pneg %p130
    %p137 = scmp.eq.s32.totalorder %s11, 1
    %p138 = por %p136, %p137
    %p139 = scmp.ne.s32.totalorder %s131, %s134
    %p140 = scmp.eq.s32.totalorder %s11, 0
    %p141 = por %p139, %p140
    %p142 = scmp.ne.s32.totalorder %s131, %s134
    %p143 = scmp.eq.s32.totalorder %s16, 1
    %p144 = por %p142, %p143
    %p145 = scmp.ne.s32.totalorder %s134, %s135
    %p146 = scmp.eq.s32.totalorder %s16, 0
    %p147 = por %p145, %p146
    %p148 = scmp.ne.s32.totalorder %s134, %s135
    %p149 = scmp.eq.s32.totalorder %s17, 1
    %p150 = por %p148, %p149
    %p152 = scmp.ne.s32.totalorder %s135, %s151
    %p153 = scmp.eq.s32.totalorder %s17, 0
    %p154 = por %p152, %p153
    %p155 = scmp.le.s32.totalorder 1, %s11
    %p156 = scmp.lt.s32.totalorder %s11, 3
    %p157 = pnand %p155, %p156
    %p158 = pneg %p157
    // Predicated region
    $region9: #{tpu_custom_call.1} parent=5 // pred_check
      _
    $region10: #{tpu_custom_call.1} parent=5 // pred_check_branch
      %160 = sbr.rel (%p157) target = $region12
    $region11: #{tpu_custom_call.1} parent=5 // pred_region
      %s161 = ssub.s32 %s11, 1
      // Predicated region
      $region13: #{tpu_custom_call.1} parent=11 // pred_check
        %p162 = pneg %p58
      $region14: #{tpu_custom_call.1} parent=11 // pred_check_branch
        %164 = sbr.rel (%p162) target = $region16
      $region15: #{tpu_custom_call.1} parent=11 // pred_region
        _
      $region16: #{tpu_custom_call.1} parent=11 // pred_fallthru
        _
      // Predicated region
      $region17: #{tpu_custom_call.1} parent=11 // pred_check
        %p165 = pneg %p79
      $region18: #{tpu_custom_call.1} parent=11 // pred_check_branch
        %167 = sbr.rel (%p165) target = $region20
      $region19: #{tpu_custom_call.1} parent=11 // pred_region
        _
      $region20: #{tpu_custom_call.1} parent=11 // pred_fallthru
        _
      // Predicated region
      $region21: #{tpu_custom_call.1} parent=11 // pred_check
        %p168 = pneg %p100
      $region22: #{tpu_custom_call.1} parent=11 // pred_check_branch
        %170 = sbr.rel (%p168) target = $region24
      $region23: #{tpu_custom_call.1} parent=11 // pred_region
        _
      $region24: #{tpu_custom_call.1} parent=11 // pred_fallthru
        _
      // Predicated region
      $region25: #{tpu_custom_call.1} parent=11 // pred_check
        %p171 = pneg %p121
      $region26: #{tpu_custom_call.1} parent=11 // pred_check_branch
        %173 = sbr.rel (%p171) target = $region28
      $region27: #{tpu_custom_call.1} parent=11 // pred_region
        _
      $region28: #{tpu_custom_call.1} parent=11 // pred_fallthru
        _
    $region12: #{tpu_custom_call.1} parent=5 // pred_fallthru
      _
    %p174 = scmp.lt.s32.totalorder %s11, 2
    // Predicated region
    $region29: #{tpu_custom_call.1} parent=5 // pred_check
      %p175 = pneg %p174
    $region30: #{tpu_custom_call.1} parent=5 // pred_check_branch
      %177 = sbr.rel (%p175) target = $region32
    $region31: #{tpu_custom_call.1} parent=5 // pred_region
      // Predicated region
      $region33: #{tpu_custom_call.1} parent=31 // pred_check
        %p178 = pneg %p31
      $region34: #{tpu_custom_call.1} parent=31 // pred_check_branch
        %180 = sbr.rel (%p178) target = $region36
      $region35: #{tpu_custom_call.1} parent=31 // pred_region
        %p181 = scmp.lt.s32.totalorder %s11, 1
        %s182 = scalar_select %p181, %s11, 1
        %s183 = smul.addr %s182, 4
        %s184 = smul.addr %s183, 8
        %s185 = scalar_lea.vmem %s0, %s184
      $region36: #{tpu_custom_call.1} parent=31 // pred_fallthru
        _
    $region32: #{tpu_custom_call.1} parent=5 // pred_fallthru
      _
    %p186 = scmp.le.s32.totalorder 1, %s11
    %p187 = scmp.lt.s32.totalorder %s11, 3
    %p188 = pnand %p186, %p187
    %p189 = pneg %p188
    // Predicated region
    $region37: #{tpu_custom_call.1} parent=5 // pred_check
      _
    $region38: #{tpu_custom_call.1} parent=5 // pred_check_branch
      %191 = sbr.rel (%p188) target = $region40
    $region39: #{tpu_custom_call.1} parent=5 // pred_region
      %s192 = ssub.s32 %s11, 1
      %p193 = scmp.lt.s32.totalorder %s16, 1
      %s194 = scalar_select %p193, %s16, 1
      %s195 = smul.addr %s194, 4
      %s196 = smul.addr %s195, 8
      %s197 = scalar_lea.vmem %s0, %s196
      %p198 = pneg %p37
      %p199 = pneg %p34
      %p200 = pneg %p58
      %p201 = pneg %p55
      %p202 = pneg %p79
      %p203 = pneg %p76
      %p204 = pneg %p100
      %p205 = pneg %p97
      %p206 = pneg %p121
      %p207 = pneg %p118
      %p208 = pneg %p147
      %p209 = pneg %p144
      %p210 = scmp.lt.s32.totalorder %s16, 1
      %s211 = scalar_select %p210, %s16, 1
      %s212 = smul.addr %s211, 4
      %s213 = smul.addr %s212, 8
      %s214 = scalar_lea.vmem %s5, %s213
      %p215 = scmp.lt.s32.totalorder %s16, 1
      %s216 = scalar_select %p215, %s16, 1
      %s217 = smul.addr %s216, 4
      %s218 = smul.addr %s217, 8
      %s219 = scalar_lea.vmem %s0, %s218
      %p220 = scmp.lt.s32.totalorder %s16, 1
      %s221 = scalar_select %p220, %s16, 1
      %s222 = smul.addr %s221, 4
      %s223 = smul.addr %s222, 8
      %s224 = scalar_lea.vmem %s5, %s223
      %v225 = vld [vmem:[%s219] sm:$0xff]
      %v226 = vld [vmem:[%s219 + $0x8] sm:$0xff]
      %v227 = vld [vmem:[%s219 + $0x10] sm:$0xff]
      %v228 = vld [vmem:[%s219 + $0x18] sm:$0xff]
      %vm233 = vcmask 1040384
      %v234 = vrot.slane %v225, 7
      %v235 = vrot.slane %v226, 7
      %v236 = vsel %vm233, %v234, %v235
      %v237 = vrot.slane %v227, 7
      %v238 = vsel %vm233, %v235, %v237
      %v239 = vrot.slane %v228, 7
      %v240 = vsel %vm233, %v237, %v239
      %v246 = vsel %vm233, 0.0, %v234
      %v247 = vsel %vm233, %v239, 0.0
      %vm250 = vcmask 1046528
      %v251 = vrot.slane %v246, 1
      %v252 = vrot.slane %v236, 1
      %v253 = vsel %vm250, %v251, %v252
      %v254 = vrot.slane %v238, 1
      %v255 = vsel %vm250, %v252, %v254
      %v256 = vrot.slane %v240, 1
      %v257 = vsel %vm250, %v254, %v256
      %v258 = vrot.slane %v247, 1
      %v259 = vsel %vm250, %v256, %v258
      %260 = vrot.lane.b32.xlu0 %v253, 16
      %v261 = vpop.permute.xlu0 %260
      %262 = vrot.lane.b32.xlu0 %v255, 16
      %v263 = vpop.permute.xlu0 %262
      %264 = vrot.lane.b32.xlu0 %v257, 16
      %v265 = vpop.permute.xlu0 %264
      %266 = vrot.lane.b32.xlu0 %v259, 16
      %v267 = vpop.permute.xlu0 %266
      %vm272 = vcmask 1045504
      %v273 = vrot.slane %v246, 2
      %v274 = vrot.slane %v236, 2
      %v275 = vsel %vm272, %v273, %v274
      %v276 = vrot.slane %v238, 2
      %v277 = vsel %vm272, %v274, %v276
      %v278 = vrot.slane %v240, 2
      %v279 = vsel %vm272, %v276, %v278
      %v280 = vrot.slane %v247, 2
      %v281 = vsel %vm272, %v278, %v280
      %282 = vrot.lane.b32.xlu0 %v275, 32
      %v283 = vpop.permute.xlu0 %282
      %284 = vrot.lane.b32.xlu0 %v277, 32
      %v285 = vpop.permute.xlu0 %284
      %286 = vrot.lane.b32.xlu0 %v279, 32
      %v287 = vpop.permute.xlu0 %286
      %288 = vrot.lane.b32.xlu0 %v281, 32
      %v289 = vpop.permute.xlu0 %288
      %vm294 = vcmask 130048
      %v295 = vsel %vm294, %v246, %v261
      %v296 = vsel %vm294, %v236, %v263
      %v297 = vsel %vm294, %v238, %v265
      %v298 = vsel %vm294, %v240, %v267
      %vm299 = vcmask 261120
      %v300 = vsel %vm299, %v295, %v283
      %v301 = vsel %vm299, %v296, %v285
      %v302 = vsel %vm299, %v297, %v287
      %v303 = vsel %vm299, %v298, %v289
      %v304 = vld [vmem:[%s1] sm:$0xff]
      %v305 = vld [vmem:[%s1 + $0x8] sm:$0xff]
      %v306 = vld [vmem:[%s1 + $0x10] sm:$0xff]
      %v307 = vld [vmem:[%s1 + $0x18] sm:$0xff]
      %v308 = vld [vmem:[%s1 + $0x20] sm:$0xff]
      %v309 = vld [vmem:[%s1 + $0x28] sm:$0xff]
      %v310 = vld [vmem:[%s2] sm:$0x1]
      %v312 = vperm.slane %v310, 0
      %vm314 = vcmask 392192
      %v316 = vsel %vm314, %v300, 0
      %v319 = vsel %vm314, %v301, 0
      %v322 = vsel %vm314, %v302, 0
      %v325 = vsel %vm314, %v303, 0
      %327 = vmatpush.msra.mxu0 0.0
      %328 = vmatpush.msra.mxu0 0.0
      %329 = vmatpush.msra.mxu0 0.0
      %330 = vmatpush.msra.mxu0 0.0
      %331 = vmatpush.msra.mxu0 0.0
      %332 = vmatpush.msra.mxu0 0.0
      %333 = vmatpush.msra.mxu0 0.0
      %334 = vmatpush.msra.mxu0 0.0
      %335 = vmatpush.msra.mxu0 0.0
      %336 = vmatpush.msra.mxu0 0.0
      %337 = vmatpush.msra.mxu0 %v309
      %338 = vmatpush.msra.mxu0 %v308
      %339 = vmatpush.msra.mxu0 %v307
      %340 = vmatpush.msra.mxu0 %v306
      %341 = vmatpush.msra.mxu0 %v305
      %342 = vmatpush.msra.mxu0 %v304
      %343 = vmatmul.f32.gmra.mxu0 %v316
      %v344 = vpop.f32.mrf.mxu0
      %v345 = vadd.f32 %v312, %v344
      %346 = vmatmul.f32.gmra.mxu0 %v319
      %v347 = vpop.f32.mrf.mxu0
      %v348 = vadd.f32 %v312, %v347
      %349 = vmatmul.f32.gmra.mxu0 %v322
      %v350 = vpop.f32.mrf.mxu0
      %v351 = vadd.f32 %v312, %v350
      %352 = vmatmul.f32.gmra.mxu0 %v325
      %v353 = vpop.f32.mrf.mxu0
      %v354 = vadd.f32 %v312, %v353
      %355 = vdwg.mxu0
      %v356 = vmax.f32 %v345, 0.0
      %v357 = vmax.f32 %v348, 0.0
      %v358 = vmax.f32 %v351, 0.0
      %v359 = vmax.f32 %v354, 0.0
      %v360 = vsel %vm294, %v356, 0.0
      %v361 = vsel %vm294, %v357, 0.0
      %v362 = vadd.f32 %v360, %v361
      %v363 = vsel %vm294, %v358, 0.0
      %v364 = vadd.f32 %v362, %v363
      %v365 = vsel %vm294, %v359, 0.0
      %v366 = vadd.f32 %v364, %v365
      %v367 = vrot.slane %v366, 4
      %v368 = vadd.f32 %v366, %v367
      %v369 = vrot.slane %v368, 2
      %v370 = vadd.f32 %v368, %v369
      %v371 = vrot.slane %v370, 1
      %v372 = vadd.f32 %v370, %v371
      %v373 = vrcp.pop 32.0
      %v374 = vmul.f32 32.0, %v373
      %v375 = vsub.f32 1.0, %v374
      %v376 = vmul.f32 %v373, %v375
      %v377 = vadd.f32 %v373, %v376
      %vm378 = vweird.f32 %v373
      %v379 = vsel %vm378, %v373, %v377
      %v380 = vmul.f32 %v372, %v379
      %v381 = vsub.f32 %v356, %v380
      %v382 = vsub.f32 %v357, %v380
      %v383 = vsub.f32 %v358, %v380
      %v384 = vsub.f32 %v359, %v380
      %v385 = vmul.f32 %v381, %v381
      %v386 = vmul.f32 %v382, %v382
      %v387 = vmul.f32 %v383, %v383
      %v388 = vmul.f32 %v384, %v384
      %v389 = vsel %vm294, %v385, 0.0
      %v390 = vsel %vm294, %v386, 0.0
      %v391 = vadd.f32 %v389, %v390
      %v392 = vsel %vm294, %v387, 0.0
      %v393 = vadd.f32 %v391, %v392
      %v394 = vsel %vm294, %v388, 0.0
      %v395 = vadd.f32 %v393, %v394
      %v396 = vrot.slane %v395, 4
      %v397 = vadd.f32 %v395, %v396
      %v398 = vrot.slane %v397, 2
      %v399 = vadd.f32 %v397, %v398
      %v400 = vrot.slane %v399, 1
      %v401 = vadd.f32 %v399, %v400
      %v402 = vmul.f32 %v401, 0.032258064
      %v403 = vrsqrt.pop %v402
      %v404 = vmul.f32 %v403, %v402
      %v405 = vmul.f32 %v404, %v403
      %v406 = vmul.f32 0.5, %v405
      %v407 = vsub.f32 1.5, %v406
      %v408 = vmul.f32 %v403, %v407
      %v409 = vmul.f32 %v402, %v408
      %vm410 = vcmp.eq.f32.partialorder %v402, inf
      %v411 = vsel %vm410, %v402, %v409
      %vm412 = vcmp.eq.f32.partialorder %v402, 0.0
      %v413 = vand.u32 %v402, 2147483648
      %v414 = vsel %vm412, %v413, %v411
      %v415 = vadd.f32 %v414, 1e-06
      %v416 = vrcp.pop %v415
      %v417 = vmul.f32 %v415, %v416
      %v418 = vsub.f32 1.0, %v417
      %v419 = vmul.f32 %v416, %v418
      %v420 = vadd.f32 %v416, %v419
      %vm421 = vweird.f32 %v415
      %vm422 = vweird.f32 %v416
      %vm423 = vmor %vm421, %vm422
      %v424 = vsel %vm423, %v416, %v420
      %v425 = vand.u32 2147483647, %v415
      %vm426 = vcmp.eq.f32.partialorder %v425, 8.507059e+37
      %v427 = vand.u32 %v415, 2147483648
      %v428 = vor.u32 1.1754944e-38, %v427
      %v429 = vsel %vm426, %v428, %v424
      %v430 = vld [vmem:[%s3] sm:$0xff]
      %v431 = vld [vmem:[%s3 + $0x8] sm:$0xff]
      %v432 = vld [vmem:[%s3 + $0x10] sm:$0xff]
      %v433 = vld [vmem:[%s3 + $0x18] sm:$0xff]
      %435 = vset.pattern.permute.xlu0 0
      %436 = vperm.xlu0 %435, %v430
      %v437 = vpop.permute.xlu0 %436
      %440 = vset.pattern.permute.xlu0 0
      %441 = vperm.xlu0 %440, %v431
      %v442 = vpop.permute.xlu0 %441
      %445 = vset.pattern.permute.xlu0 0
      %446 = vperm.xlu0 %445, %v432
      %v447 = vpop.permute.xlu0 %446
      %450 = vset.pattern.permute.xlu0 0
      %451 = vperm.xlu0 %450, %v433
      %v452 = vpop.permute.xlu0 %451
      %v454 = vmul.f32 %v437, %v381
      %v455 = vmul.f32 %v442, %v382
      %v456 = vmul.f32 %v447, %v383
      %v457 = vmul.f32 %v452, %v384
      %v458 = vmul.f32 %v454, %v429
      %v459 = vmul.f32 %v455, %v429
      %v460 = vmul.f32 %v456, %v429
      %v461 = vmul.f32 %v457, %v429
      %v462 = vld [vmem:[%s4] sm:$0xff]
      %v463 = vld [vmem:[%s4 + $0x8] sm:$0xff]
      %v464 = vld [vmem:[%s4 + $0x10] sm:$0xff]
      %v465 = vld [vmem:[%s4 + $0x18] sm:$0xff]
      %467 = vset.pattern.permute.xlu0 0
      %468 = vperm.xlu0 %467, %v462
      %v469 = vpop.permute.xlu0 %468
      %472 = vset.pattern.permute.xlu0 0
      %473 = vperm.xlu0 %472, %v463
      %v474 = vpop.permute.xlu0 %473
      %477 = vset.pattern.permute.xlu0 0
      %478 = vperm.xlu0 %477, %v464
      %v479 = vpop.permute.xlu0 %478
      %482 = vset.pattern.permute.xlu0 0
      %483 = vperm.xlu0 %482, %v465
      %v484 = vpop.permute.xlu0 %483
      %v486 = vadd.f32 %v458, %v469
      %v487 = vadd.f32 %v459, %v474
      %v488 = vadd.f32 %v460, %v479
      %v489 = vadd.f32 %v461, %v484
      %v490 = vadd.f32 %v486, %v225
      %v491 = vadd.f32 %v487, %v226
      %v492 = vadd.f32 %v488, %v227
      %v493 = vadd.f32 %v489, %v228
      %494 = vst.msk [vmem:[%s224] sm:$0xff] %vm294, %v490
      %495 = vst.msk [vmem:[%s224 + $0x8] sm:$0xff] %vm294, %v491
      %496 = vst.msk [vmem:[%s224 + $0x10] sm:$0xff] %vm294, %v492
      %497 = vst.msk [vmem:[%s224 + $0x18] sm:$0xff] %vm294, %v493
      %p498 = scmp.lt.s32.totalorder %s16, 1
      %s499 = scalar_select %p498, %s16, 1
      %s500 = smul.addr %s499, 4
      %s501 = smul.addr %s500, 8
      %s502 = scalar_lea.vmem %s5, %s501
      // Predicated region
      $region41: #{tpu_custom_call.1} parent=39 // pred_check
        %p503 = pneg %p144
      $region42: #{tpu_custom_call.1} parent=39 // pred_check_branch
        %505 = sbr.rel (%p503) target = $region44
      $region43: #{tpu_custom_call.1} parent=39 // pred_region
        _
      $region44: #{tpu_custom_call.1} parent=39 // pred_fallthru
        _
    $region40: #{tpu_custom_call.1} parent=5 // pred_fallthru
      _
    %p506 = scmp.le.s32.totalorder 2, %s11
    // Predicated region
    $region45: #{tpu_custom_call.1} parent=5 // pred_check
      %p507 = pneg %p506
    $region46: #{tpu_custom_call.1} parent=5 // pred_check_branch
      %509 = sbr.rel (%p507) target = $region48
    $region47: #{tpu_custom_call.1} parent=5 // pred_region
      %s510 = ssub.s32 %s11, 2
      // Predicated region
      $region49: #{tpu_custom_call.1} parent=47 // pred_check
        %p511 = pneg %p150
      $region50: #{tpu_custom_call.1} parent=47 // pred_check_branch
        %513 = sbr.rel (%p511) target = $region52
      $region51: #{tpu_custom_call.1} parent=47 // pred_region
        %p514 = scmp.lt.s32.totalorder %s17, 1
        %s515 = scalar_select %p514, %s17, 1
        %s516 = smul.addr %s515, 4
        %s517 = smul.addr %s516, 8
        %s518 = scalar_lea.vmem %s5, %s517
      $region52: #{tpu_custom_call.1} parent=47 // pred_fallthru
        _
    $region48: #{tpu_custom_call.1} parent=5 // pred_fallthru
      _
  $region6: #{tpu_custom_call.1} parent=0 // loop_footer
    %s15 = sadd.s32 1, %s11
  $region7: #{tpu_custom_call.1} parent=0 // loop_footer_branch
    %10 = sbr.rel target = $region3
  $region8: #{tpu_custom_call.1} parent=0 // loop_exit
    _

</llo_original>
